<compile_context>
chip_gen: v5e
topology: v5e:2x2
jax: 0.10.0
libtpu: 0.0.40
codegen_flags: <defaults>
</compile_context>

<pallas_src>
import numpy as np
import jax
import jax.numpy as jnp
from jax.experimental import pallas as pl
from jax.experimental.pallas import tpu as pltpu

# ---- synthetic "network_architecture" hyper-parameters -----------------------
D = 8          # dim (flow dimension / MADE input_layer)
H = 32         # hidden_layer
N_BLOCK = 2    # n_block hidden layers in the MADE
N_FLOWS = 3    # length (number of IAF layers)
SEED = 11      # seed_num for the MADE masks
STABLE = True  # "stable" IAF variant

PACK_W = 128                    # lane-dense packed output width (one (8,128) vreg tile)
ELBO_LANE = (N_FLOWS + 1) * D   # lane holding elbo
LOGJ_LANE = ELBO_LANE + 1       # lane holding accumulated log-jacobian

WCOLS = max(H, 2 * D)           # 32  (lane width of the packed parameter slabs)
WROWS = D + 2 * H               # 72  (sublane-aligned: each section starts on a multiple of 8)
_W_ROW_OFF = (0, D, D + H)      # row offsets of w0 / w1 / w2 inside the weight slab
_HALF_LOG_2PI = 0.5 * float(np.log(2.0 * np.pi))


def _elu(x):
    # exp-based form (guaranteed Mosaic lowering); expm1 precision near 0 is irrelevant here.
    return jnp.where(x > 0, x, jnp.exp(x) - 1.0)


# -------------------------- fused Pallas kernel --------------------------------
def _iaf_flow_kernel(x_ref, w_ref, b_ref, out_ref):
    x = x_ref[...]                      # (TB, D)
    z = x
    logj = jnp.zeros((x.shape[0], 1), jnp.float32)
    zs = [x]

    for i in range(N_FLOWS):            # unrolled: N_FLOWS is a Python constant
        wi = w_ref[i]                   # (WROWS, WCOLS) VMEM-resident weight slab
        bi = b_ref[i]                   # (8, WCOLS)     VMEM-resident bias slab
        w0 = wi[_W_ROW_OFF[0]:_W_ROW_OFF[0] + D, :H]        # (D, H)   mask pre-folded
        w1 = wi[_W_ROW_OFF[1]:_W_ROW_OFF[1] + H, :H]        # (H, H)
        w2 = wi[_W_ROW_OFF[2]:_W_ROW_OFF[2] + H, :2 * D]    # (H, 2D)
        b0 = bi[0:1, :H]
        b1 = bi[1:2, :H]
        b2 = bi[2:3, :2 * D]

        # MADE (masked weights already folded in) -- three MXU matmuls + ELU.
        h = _elu(jnp.dot(z, w0, preferred_element_type=jnp.float32) + b0)
        h = _elu(jnp.dot(h, w1, preferred_element_type=jnp.float32) + b1)
        ms = jnp.dot(h, w2, preferred_element_type=jnp.float32) + b2
        mu = ms[:, :D]                  # in-vreg lane slices
        s = ms[:, D:]

        if STABLE:
            # Shared e = exp(-|s|): sigma via where + approx vrcp (EUP), log-sigma via log(1+e).
            e = jnp.exp(-jnp.abs(s))
            sig = jnp.where(s >= 0, 1.0, e) * pl.reciprocal(1.0 + e, approx=True)
            log_sig = jnp.minimum(s, 0.0) - jnp.log(1.0 + e)
            z = sig * z + (1.0 - sig) * mu
            logj = logj + jnp.sum(log_sig, axis=1, keepdims=True)
        else:
            z = z * jnp.exp(s) + mu
            logj = logj + jnp.sum(s, axis=1, keepdims=True)
        zs.append(z)

    # Standard-Normal base distribution: log_prob(z_f[0]).sum(1)
    base_lp = jnp.sum(-0.5 * x * x - _HALF_LOG_2PI, axis=1, keepdims=True)
    elbo = logj - base_lp

    # ONE unmasked lane-dense (TB, 128) store: [x | z1 | ... | zN | elbo | logj | 0...]
    pad = jnp.zeros((x.shape[0], PACK_W - LOGJ_LANE - 1), jnp.float32)
    out_ref[...] = jnp.concatenate(zs + [elbo, logj, pad], axis=1)


# -------------------------- wrapper --------------------------------------------
def iaf_flow_forward(x, w_slab, b_slab, *, tb=None):
    """Mirrors InverseAutoregressiveFlow.forward: returns (z_f, elbo, log_jacobian)."""
    btot = x.shape[0]
    if tb is None:
        tb = min(btot, 256)
    assert btot % tb == 0 and tb % 8 == 0, "batch must be a multiple of the (8-aligned) tile"

    packed = pl.pallas_call(
        _iaf_flow_kernel,
        out_shape=jax.ShapeDtypeStruct((btot, PACK_W), jnp.float32),
        grid=(pl.cdiv(btot, tb),),
        in_specs=[
            pl.BlockSpec((tb, D), lambda i: (i, 0)),             # x: blocked over batch
            pl.BlockSpec(w_slab.shape, lambda i: (0, 0, 0)),     # weights: resident (block 0)
            pl.BlockSpec(b_slab.shape, lambda i: (0, 0, 0)),     # biases: resident (block 0)
        ],
        out_specs=pl.BlockSpec((tb, PACK_W), lambda i: (i, 0)),
        compiler_params=pltpu.CompilerParams(dimension_semantics=("parallel",)),
    )(x, w_slab, b_slab)

    z_f = [packed[:, i * D:(i + 1) * D] for i in range(N_FLOWS + 1)]
    elbo = packed[:, ELBO_LANE]
    log_jacobian = packed[:, LOGJ_LANE]
    # TODO(synk): world.propose_change_transformed_value / compute_score depend on the
    # beanmachine World graph state and have no Pallas equivalent; the `score` ELBO term is omitted.
    return z_f, elbo, log_jacobian


# -------------------------- deterministic parameter init ------------------------
def init_params(key):
    """Returns (w_slab, b_slab) with MADE masks folded into the weights.

    w_slab: (N_FLOWS, WROWS, WCOLS)  rows [0,D)=w0, [D,D+H)=w1, [D+H,D+2H)=w2
    b_slab: (N_FLOWS, 8, WCOLS)      row 0=b0, row 1=b1, row 2=b2
    """
    sizes = [D] + [H] * N_BLOCK + [2 * D]

    # MADE masks (deterministic numpy RandomState, as in MaskedAutoencoder.build_masks)
    rng = np.random.RandomState(SEED)
    degrees = [np.arange(D)]
    for _ in range(N_BLOCK):
        degrees.append(rng.randint(degrees[-1].min(), D - 1, size=H))
    masks = [(degrees[l][:, None] <= degrees[l + 1][None, :]).astype(np.float32)
             for l in range(N_BLOCK)]
    out_mask = (degrees[-1][:, None] < degrees[0][None, :]).astype(np.float32)
    out_mask = np.concatenate([out_mask] * (2 * D // D), axis=1)   # output_layer = 2*dim
    masks.append(out_mask)

    w_slab = np.zeros((N_FLOWS, WROWS, WCOLS), np.float32)
    b_slab = np.zeros((N_FLOWS, 8, WCOLS), np.float32)
    for f in range(N_FLOWS):
        for l, (fin, fout) in enumerate(zip(sizes[:-1], sizes[1:])):
            key, kw, kb = jax.random.split(key, 3)
            bound = 1.0 / np.sqrt(fin)
            w = jax.random.uniform(kw, (fin, fout), jnp.float32, -bound, bound)
            b = jax.random.uniform(kb, (1, fout), jnp.float32, -bound, bound)
            w_slab[f, _W_ROW_OFF[l]:_W_ROW_OFF[l] + fin, :fout] = np.asarray(w) * masks[l]
            b_slab[f, l, :fout] = np.asarray(b)[0]
    return jnp.asarray(w_slab), jnp.asarray(b_slab)


# -------------------------- pure-JAX reference (for sanity check) ---------------
def _reference_forward(x, w_slab, b_slab):
    z = x
    z_f = [x]
    logj = jnp.zeros((x.shape[0],), jnp.float32)
    for i in range(N_FLOWS):
        w0 = w_slab[i, _W_ROW_OFF[0]:_W_ROW_OFF[0] + D, :H]
        w1 = w_slab[i, _W_ROW_OFF[1]:_W_ROW_OFF[1] + H, :H]
        w2 = w_slab[i, _W_ROW_OFF[2]:_W_ROW_OFF[2] + H, :2 * D]
        b0 = b_slab[i, 0:1, :H]
        b1 = b_slab[i, 1:2, :H]
        b2 = b_slab[i, 2:3, :2 * D]
        h = _elu(z @ w0 + b0)
        h = _elu(h @ w1 + b1)
        ms = h @ w2 + b2
        mu, s = ms[:, :D], ms[:, D:]
        log_sig = jnp.minimum(s, 0.0) - jnp.log(1.0 + jnp.exp(-jnp.abs(s)))
        sig = jnp.exp(log_sig)
        z = sig * z + (1.0 - sig) * mu
        logj = logj + jnp.sum(log_sig, axis=1)
        z_f.append(z)
    base_lp = jnp.sum(-0.5 * x * x - _HALF_LOG_2PI, axis=1)
    return z_f, logj - base_lp, logj


if __name__ == "__main__":
    key = jax.random.PRNGKey(0)
    kx, kp = jax.random.split(key)
    B = 16   # small demo batch; multi-step grid is still exercised (TB=8 -> 2 grid steps)
    TB = 8
    x = jax.random.normal(kx, (B, D), jnp.float32)
    w_slab, b_slab = init_params(kp)

    fwd = jax.jit(lambda xx: iaf_flow_forward(xx, w_slab, b_slab, tb=TB))
    z_f, elbo, log_jacobian = fwd(x)
    jax.block_until_ready((z_f, elbo, log_jacobian))

    assert len(z_f) == N_FLOWS + 1
    assert z_f[-1].shape == (B, D)
    assert elbo.shape == (B,)
    assert log_jacobian.shape == (B,)

    # sanity-check against a pure-JAX reference (tolerance covers the approx vrcp in-kernel)
    zr, er, lr = _reference_forward(x, w_slab, b_slab)
    np.testing.assert_allclose(np.asarray(z_f[-1]), np.asarray(zr[-1]), rtol=5e-3, atol=5e-3)
    np.testing.assert_allclose(np.asarray(elbo), np.asarray(er), rtol=5e-3, atol=5e-3)
    np.testing.assert_allclose(np.asarray(log_jacobian), np.asarray(lr), rtol=5e-3, atol=5e-3)

    print("KERNEL_OK")
</pallas_src>

<mosaic_0001>
module attributes {stable_mosaic.version = 11 : i64} {
  func.func @_iaf_flow_kernel(%arg0: i32, %arg1: memref<8x8xf32, #tpu.memory_space<vmem>>, %arg2: memref<3x72x32xf32, #tpu.memory_space<vmem>>, %arg3: memref<3x8x32xf32, #tpu.memory_space<vmem>>, %arg4: memref<8x128xf32, #tpu.memory_space<vmem>>) attributes {dimension_semantics = [#tpu.dimension_semantics<parallel>], iteration_bounds = array<i64: 2>, scalar_prefetch = 0 : i64, scratch_operands = 0 : i64, tpu.core_type = #tpu.core_type<tc>, window_params = [{transform_indices = @transform_0, window_bounds = array<i64: 8, 8>}, {pipeline_mode = #tpu.pipeline_mode<synchronous>, transform_indices = @transform_1, window_bounds = array<i64: 3, 72, 32>}, {pipeline_mode = #tpu.pipeline_mode<synchronous>, transform_indices = @transform_2, window_bounds = array<i64: 3, 8, 32>}, {transform_indices = @transform_3, window_bounds = array<i64: 8, 128>}]} {
    %c0 = arith.constant 0 : index
    %c0_0 = arith.constant 0 : index
    %0 = vector.load %arg1[%c0, %c0_0] : memref<8x8xf32, #tpu.memory_space<vmem>>, vector<8x8xf32>
    %cst = arith.constant 0.000000e+00 : f32
    %1 = vector.broadcast %cst : f32 to vector<8x1xf32>
    %c0_1 = arith.constant 0 : index
    %c0_2 = arith.constant 0 : index
    %c0_3 = arith.constant 0 : index
    %2 = vector.load %arg2[%c0_1, %c0_2, %c0_3] : memref<3x72x32xf32, #tpu.memory_space<vmem>>, vector<1x72x32xf32>
    %3 = vector.shape_cast %2 : vector<1x72x32xf32> to vector<72x32xf32>
    %c0_4 = arith.constant 0 : index
    %c0_5 = arith.constant 0 : index
    %c0_6 = arith.constant 0 : index
    %4 = vector.load %arg3[%c0_4, %c0_5, %c0_6] : memref<3x8x32xf32, #tpu.memory_space<vmem>>, vector<1x8x32xf32>
    %5 = vector.shape_cast %4 : vector<1x8x32xf32> to vector<8x32xf32>
    %6 = vector.extract_strided_slice %3 {offsets = [0, 0], sizes = [8, 32], strides = [1, 1]} : vector<72x32xf32> to vector<8x32xf32>
    %7 = vector.extract_strided_slice %3 {offsets = [8, 0], sizes = [32, 32], strides = [1, 1]} : vector<72x32xf32> to vector<32x32xf32>
    %8 = vector.extract_strided_slice %3 {offsets = [40, 0], sizes = [32, 16], strides = [1, 1]} : vector<72x32xf32> to vector<32x16xf32>
    %9 = vector.extract_strided_slice %5 {offsets = [0, 0], sizes = [1, 32], strides = [1, 1]} : vector<8x32xf32> to vector<1x32xf32>
    %10 = vector.extract_strided_slice %5 {offsets = [1, 0], sizes = [1, 32], strides = [1, 1]} : vector<8x32xf32> to vector<1x32xf32>
    %11 = vector.extract_strided_slice %5 {offsets = [2, 0], sizes = [1, 16], strides = [1, 1]} : vector<8x32xf32> to vector<1x16xf32>
    %cst_7 = arith.constant dense<0.000000e+00> : vector<8x32xf32>
    %12 = tpu.matmul %0, %6, %cst_7 {dimension_numbers = #tpu.dot_dimension_numbers<[1], [0], [0], [1], [0, 0, 1, 1], [], []>} : vector<8x8xf32>, vector<8x32xf32>, vector<8x32xf32> -> vector<8x32xf32>
    %13 = vector.broadcast %9 : vector<1x32xf32> to vector<8x32xf32>
    %14 = arith.addf %12, %13 : vector<8x32xf32>
    %cst_8 = arith.constant 0.000000e+00 : f32
    %15 = vector.broadcast %cst_8 : f32 to vector<8x32xf32>
    %16 = arith.cmpf ogt, %14, %15 : vector<8x32xf32>
    %17 = math.exp %14 : vector<8x32xf32>
    %cst_9 = arith.constant 1.000000e+00 : f32
    %18 = vector.broadcast %cst_9 : f32 to vector<8x32xf32>
    %19 = arith.subf %17, %18 : vector<8x32xf32>
    %20 = arith.select %16, %14, %19 : vector<8x32xi1>, vector<8x32xf32>
    %cst_10 = arith.constant dense<0.000000e+00> : vector<8x32xf32>
    %21 = tpu.matmul %20, %7, %cst_10 {dimension_numbers = #tpu.dot_dimension_numbers<[1], [0], [0], [1], [0, 0, 1, 1], [], []>} : vector<8x32xf32>, vector<32x32xf32>, vector<8x32xf32> -> vector<8x32xf32>
    %22 = vector.broadcast %10 : vector<1x32xf32> to vector<8x32xf32>
    %23 = arith.addf %21, %22 : vector<8x32xf32>
    %cst_11 = arith.constant 0.000000e+00 : f32
    %24 = vector.broadcast %cst_11 : f32 to vector<8x32xf32>
    %25 = arith.cmpf ogt, %23, %24 : vector<8x32xf32>
    %26 = math.exp %23 : vector<8x32xf32>
    %cst_12 = arith.constant 1.000000e+00 : f32
    %27 = vector.broadcast %cst_12 : f32 to vector<8x32xf32>
    %28 = arith.subf %26, %27 : vector<8x32xf32>
    %29 = arith.select %25, %23, %28 : vector<8x32xi1>, vector<8x32xf32>
    %cst_13 = arith.constant dense<0.000000e+00> : vector<8x16xf32>
    %30 = tpu.matmul %29, %8, %cst_13 {dimension_numbers = #tpu.dot_dimension_numbers<[1], [0], [0], [1], [0, 0, 1, 1], [], []>} : vector<8x32xf32>, vector<32x16xf32>, vector<8x16xf32> -> vector<8x16xf32>
    %31 = vector.broadcast %11 : vector<1x16xf32> to vector<8x16xf32>
    %32 = arith.addf %30, %31 : vector<8x16xf32>
    %33 = vector.extract_strided_slice %32 {offsets = [0, 0], sizes = [8, 8], strides = [1, 1]} : vector<8x16xf32> to vector<8x8xf32>
    %34 = vector.extract_strided_slice %32 {offsets = [0, 8], sizes = [8, 8], strides = [1, 1]} : vector<8x16xf32> to vector<8x8xf32>
    %35 = math.absf %34 : vector<8x8xf32>
    %cst_14 = arith.constant 0.000000e+00 : f32
    %36 = vector.broadcast %cst_14 : f32 to vector<8x8xf32>
    %37 = arith.subf %36, %35 : vector<8x8xf32>
    %38 = math.exp %37 : vector<8x8xf32>
    %cst_15 = arith.constant 0.000000e+00 : f32
    %39 = vector.broadcast %cst_15 : f32 to vector<8x8xf32>
    %40 = arith.cmpf oge, %34, %39 : vector<8x8xf32>
    %cst_16 = arith.constant 1.000000e+00 : f32
    %41 = vector.broadcast %cst_16 : f32 to vector<8x8xf32>
    %42 = arith.select %40, %41, %38 : vector<8x8xi1>, vector<8x8xf32>
    %cst_17 = arith.constant 1.000000e+00 : f32
    %43 = vector.broadcast %cst_17 : f32 to vector<8x8xf32>
    %44 = arith.addf %43, %38 : vector<8x8xf32>
    %45 = tpu.reciprocal %44 {approx = true} : vector<8x8xf32> -> vector<8x8xf32>
    %46 = arith.mulf %42, %45 : vector<8x8xf32>
    %cst_18 = arith.constant 0.000000e+00 : f32
    %47 = vector.broadcast %cst_18 : f32 to vector<8x8xf32>
    %48 = arith.minimumf %34, %47 : vector<8x8xf32>
    %cst_19 = arith.constant 1.000000e+00 : f32
    %49 = vector.broadcast %cst_19 : f32 to vector<8x8xf32>
    %50 = arith.addf %49, %38 : vector<8x8xf32>
    %51 = math.log %50 : vector<8x8xf32>
    %52 = arith.subf %48, %51 : vector<8x8xf32>
    %53 = arith.mulf %46, %0 : vector<8x8xf32>
    %cst_20 = arith.constant 1.000000e+00 : f32
    %54 = vector.broadcast %cst_20 : f32 to vector<8x8xf32>
    %55 = arith.subf %54, %46 : vector<8x8xf32>
    %56 = arith.mulf %55, %33 : vector<8x8xf32>
    %57 = arith.addf %53, %56 : vector<8x8xf32>
    %cst_21 = arith.constant dense<0.000000e+00> : vector<8xf32>
    %58 = vector.multi_reduction <add>, %52, %cst_21 [1] : vector<8x8xf32> to vector<8xf32>
    %59 = vector.shape_cast %58 : vector<8xf32> to vector<8x1xf32>
    %60 = arith.addf %1, %59 : vector<8x1xf32>
    %c1 = arith.constant 1 : index
    %c0_22 = arith.constant 0 : index
    %c0_23 = arith.constant 0 : index
    %61 = vector.load %arg2[%c1, %c0_22, %c0_23] : memref<3x72x32xf32, #tpu.memory_space<vmem>>, vector<1x72x32xf32>
    %62 = vector.shape_cast %61 : vector<1x72x32xf32> to vector<72x32xf32>
    %c1_24 = arith.constant 1 : index
    %c0_25 = arith.constant 0 : index
    %c0_26 = arith.constant 0 : index
    %63 = vector.load %arg3[%c1_24, %c0_25, %c0_26] : memref<3x8x32xf32, #tpu.memory_space<vmem>>, vector<1x8x32xf32>
    %64 = vector.shape_cast %63 : vector<1x8x32xf32> to vector<8x32xf32>
    %65 = vector.extract_strided_slice %62 {offsets = [0, 0], sizes = [8, 32], strides = [1, 1]} : vector<72x32xf32> to vector<8x32xf32>
    %66 = vector.extract_strided_slice %62 {offsets = [8, 0], sizes = [32, 32], strides = [1, 1]} : vector<72x32xf32> to vector<32x32xf32>
    %67 = vector.extract_strided_slice %62 {offsets = [40, 0], sizes = [32, 16], strides = [1, 1]} : vector<72x32xf32> to vector<32x16xf32>
    %68 = vector.extract_strided_slice %64 {offsets = [0, 0], sizes = [1, 32], strides = [1, 1]} : vector<8x32xf32> to vector<1x32xf32>
    %69 = vector.extract_strided_slice %64 {offsets = [1, 0], sizes = [1, 32], strides = [1, 1]} : vector<8x32xf32> to vector<1x32xf32>
    %70 = vector.extract_strided_slice %64 {offsets = [2, 0], sizes = [1, 16], strides = [1, 1]} : vector<8x32xf32> to vector<1x16xf32>
    %cst_27 = arith.constant dense<0.000000e+00> : vector<8x32xf32>
    %71 = tpu.matmul %57, %65, %cst_27 {dimension_numbers = #tpu.dot_dimension_numbers<[1], [0], [0], [1], [0, 0, 1, 1], [], []>} : vector<8x8xf32>, vector<8x32xf32>, vector<8x32xf32> -> vector<8x32xf32>
    %72 = vector.broadcast %68 : vector<1x32xf32> to vector<8x32xf32>
    %73 = arith.addf %71, %72 : vector<8x32xf32>
    %cst_28 = arith.constant 0.000000e+00 : f32
    %74 = vector.broadcast %cst_28 : f32 to vector<8x32xf32>
    %75 = arith.cmpf ogt, %73, %74 : vector<8x32xf32>
    %76 = math.exp %73 : vector<8x32xf32>
    %cst_29 = arith.constant 1.000000e+00 : f32
    %77 = vector.broadcast %cst_29 : f32 to vector<8x32xf32>
    %78 = arith.subf %76, %77 : vector<8x32xf32>
    %79 = arith.select %75, %73, %78 : vector<8x32xi1>, vector<8x32xf32>
    %cst_30 = arith.constant dense<0.000000e+00> : vector<8x32xf32>
    %80 = tpu.matmul %79, %66, %cst_30 {dimension_numbers = #tpu.dot_dimension_numbers<[1], [0], [0], [1], [0, 0, 1, 1], [], []>} : vector<8x32xf32>, vector<32x32xf32>, vector<8x32xf32> -> vector<8x32xf32>
    %81 = vector.broadcast %69 : vector<1x32xf32> to vector<8x32xf32>
    %82 = arith.addf %80, %81 : vector<8x32xf32>
    %cst_31 = arith.constant 0.000000e+00 : f32
    %83 = vector.broadcast %cst_31 : f32 to vector<8x32xf32>
    %84 = arith.cmpf ogt, %82, %83 : vector<8x32xf32>
    %85 = math.exp %82 : vector<8x32xf32>
    %cst_32 = arith.constant 1.000000e+00 : f32
    %86 = vector.broadcast %cst_32 : f32 to vector<8x32xf32>
    %87 = arith.subf %85, %86 : vector<8x32xf32>
    %88 = arith.select %84, %82, %87 : vector<8x32xi1>, vector<8x32xf32>
    %cst_33 = arith.constant dense<0.000000e+00> : vector<8x16xf32>
    %89 = tpu.matmul %88, %67, %cst_33 {dimension_numbers = #tpu.dot_dimension_numbers<[1], [0], [0], [1], [0, 0, 1, 1], [], []>} : vector<8x32xf32>, vector<32x16xf32>, vector<8x16xf32> -> vector<8x16xf32>
    %90 = vector.broadcast %70 : vector<1x16xf32> to vector<8x16xf32>
    %91 = arith.addf %89, %90 : vector<8x16xf32>
    %92 = vector.extract_strided_slice %91 {offsets = [0, 0], sizes = [8, 8], strides = [1, 1]} : vector<8x16xf32> to vector<8x8xf32>
    %93 = vector.extract_strided_slice %91 {offsets = [0, 8], sizes = [8, 8], strides = [1, 1]} : vector<8x16xf32> to vector<8x8xf32>
    %94 = math.absf %93 : vector<8x8xf32>
    %cst_34 = arith.constant 0.000000e+00 : f32
    %95 = vector.broadcast %cst_34 : f32 to vector<8x8xf32>
    %96 = arith.subf %95, %94 : vector<8x8xf32>
    %97 = math.exp %96 : vector<8x8xf32>
    %cst_35 = arith.constant 0.000000e+00 : f32
    %98 = vector.broadcast %cst_35 : f32 to vector<8x8xf32>
    %99 = arith.cmpf oge, %93, %98 : vector<8x8xf32>
    %cst_36 = arith.constant 1.000000e+00 : f32
    %100 = vector.broadcast %cst_36 : f32 to vector<8x8xf32>
    %101 = arith.select %99, %100, %97 : vector<8x8xi1>, vector<8x8xf32>
    %cst_37 = arith.constant 1.000000e+00 : f32
    %102 = vector.broadcast %cst_37 : f32 to vector<8x8xf32>
    %103 = arith.addf %102, %97 : vector<8x8xf32>
    %104 = tpu.reciprocal %103 {approx = true} : vector<8x8xf32> -> vector<8x8xf32>
    %105 = arith.mulf %101, %104 : vector<8x8xf32>
    %cst_38 = arith.constant 0.000000e+00 : f32
    %106 = vector.broadcast %cst_38 : f32 to vector<8x8xf32>
    %107 = arith.minimumf %93, %106 : vector<8x8xf32>
    %cst_39 = arith.constant 1.000000e+00 : f32
    %108 = vector.broadcast %cst_39 : f32 to vector<8x8xf32>
    %109 = arith.addf %108, %97 : vector<8x8xf32>
    %110 = math.log %109 : vector<8x8xf32>
    %111 = arith.subf %107, %110 : vector<8x8xf32>
    %112 = arith.mulf %105, %57 : vector<8x8xf32>
    %cst_40 = arith.constant 1.000000e+00 : f32
    %113 = vector.broadcast %cst_40 : f32 to vector<8x8xf32>
    %114 = arith.subf %113, %105 : vector<8x8xf32>
    %115 = arith.mulf %114, %92 : vector<8x8xf32>
    %116 = arith.addf %112, %115 : vector<8x8xf32>
    %cst_41 = arith.constant dense<0.000000e+00> : vector<8xf32>
    %117 = vector.multi_reduction <add>, %111, %cst_41 [1] : vector<8x8xf32> to vector<8xf32>
    %118 = vector.shape_cast %117 : vector<8xf32> to vector<8x1xf32>
    %119 = arith.addf %60, %118 : vector<8x1xf32>
    %c2 = arith.constant 2 : index
    %c0_42 = arith.constant 0 : index
    %c0_43 = arith.constant 0 : index
    %120 = vector.load %arg2[%c2, %c0_42, %c0_43] : memref<3x72x32xf32, #tpu.memory_space<vmem>>, vector<1x72x32xf32>
    %121 = vector.shape_cast %120 : vector<1x72x32xf32> to vector<72x32xf32>
    %c2_44 = arith.constant 2 : index
    %c0_45 = arith.constant 0 : index
    %c0_46 = arith.constant 0 : index
    %122 = vector.load %arg3[%c2_44, %c0_45, %c0_46] : memref<3x8x32xf32, #tpu.memory_space<vmem>>, vector<1x8x32xf32>
    %123 = vector.shape_cast %122 : vector<1x8x32xf32> to vector<8x32xf32>
    %124 = vector.extract_strided_slice %121 {offsets = [0, 0], sizes = [8, 32], strides = [1, 1]} : vector<72x32xf32> to vector<8x32xf32>
    %125 = vector.extract_strided_slice %121 {offsets = [8, 0], sizes = [32, 32], strides = [1, 1]} : vector<72x32xf32> to vector<32x32xf32>
    %126 = vector.extract_strided_slice %121 {offsets = [40, 0], sizes = [32, 16], strides = [1, 1]} : vector<72x32xf32> to vector<32x16xf32>
    %127 = vector.extract_strided_slice %123 {offsets = [0, 0], sizes = [1, 32], strides = [1, 1]} : vector<8x32xf32> to vector<1x32xf32>
    %128 = vector.extract_strided_slice %123 {offsets = [1, 0], sizes = [1, 32], strides = [1, 1]} : vector<8x32xf32> to vector<1x32xf32>
    %129 = vector.extract_strided_slice %123 {offsets = [2, 0], sizes = [1, 16], strides = [1, 1]} : vector<8x32xf32> to vector<1x16xf32>
    %cst_47 = arith.constant dense<0.000000e+00> : vector<8x32xf32>
    %130 = tpu.matmul %116, %124, %cst_47 {dimension_numbers = #tpu.dot_dimension_numbers<[1], [0], [0], [1], [0, 0, 1, 1], [], []>} : vector<8x8xf32>, vector<8x32xf32>, vector<8x32xf32> -> vector<8x32xf32>
    %131 = vector.broadcast %127 : vector<1x32xf32> to vector<8x32xf32>
    %132 = arith.addf %130, %131 : vector<8x32xf32>
    %cst_48 = arith.constant 0.000000e+00 : f32
    %133 = vector.broadcast %cst_48 : f32 to vector<8x32xf32>
    %134 = arith.cmpf ogt, %132, %133 : vector<8x32xf32>
    %135 = math.exp %132 : vector<8x32xf32>
    %cst_49 = arith.constant 1.000000e+00 : f32
    %136 = vector.broadcast %cst_49 : f32 to vector<8x32xf32>
    %137 = arith.subf %135, %136 : vector<8x32xf32>
    %138 = arith.select %134, %132, %137 : vector<8x32xi1>, vector<8x32xf32>
    %cst_50 = arith.constant dense<0.000000e+00> : vector<8x32xf32>
    %139 = tpu.matmul %138, %125, %cst_50 {dimension_numbers = #tpu.dot_dimension_numbers<[1], [0], [0], [1], [0, 0, 1, 1], [], []>} : vector<8x32xf32>, vector<32x32xf32>, vector<8x32xf32> -> vector<8x32xf32>
    %140 = vector.broadcast %128 : vector<1x32xf32> to vector<8x32xf32>
    %141 = arith.addf %139, %140 : vector<8x32xf32>
    %cst_51 = arith.constant 0.000000e+00 : f32
    %142 = vector.broadcast %cst_51 : f32 to vector<8x32xf32>
    %143 = arith.cmpf ogt, %141, %142 : vector<8x32xf32>
    %144 = math.exp %141 : vector<8x32xf32>
    %cst_52 = arith.constant 1.000000e+00 : f32
    %145 = vector.broadcast %cst_52 : f32 to vector<8x32xf32>
    %146 = arith.subf %144, %145 : vector<8x32xf32>
    %147 = arith.select %143, %141, %146 : vector<8x32xi1>, vector<8x32xf32>
    %cst_53 = arith.constant dense<0.000000e+00> : vector<8x16xf32>
    %148 = tpu.matmul %147, %126, %cst_53 {dimension_numbers = #tpu.dot_dimension_numbers<[1], [0], [0], [1], [0, 0, 1, 1], [], []>} : vector<8x32xf32>, vector<32x16xf32>, vector<8x16xf32> -> vector<8x16xf32>
    %149 = vector.broadcast %129 : vector<1x16xf32> to vector<8x16xf32>
    %150 = arith.addf %148, %149 : vector<8x16xf32>
    %151 = vector.extract_strided_slice %150 {offsets = [0, 0], sizes = [8, 8], strides = [1, 1]} : vector<8x16xf32> to vector<8x8xf32>
    %152 = vector.extract_strided_slice %150 {offsets = [0, 8], sizes = [8, 8], strides = [1, 1]} : vector<8x16xf32> to vector<8x8xf32>
    %153 = math.absf %152 : vector<8x8xf32>
    %cst_54 = arith.constant 0.000000e+00 : f32
    %154 = vector.broadcast %cst_54 : f32 to vector<8x8xf32>
    %155 = arith.subf %154, %153 : vector<8x8xf32>
    %156 = math.exp %155 : vector<8x8xf32>
    %cst_55 = arith.constant 0.000000e+00 : f32
    %157 = vector.broadcast %cst_55 : f32 to vector<8x8xf32>
    %158 = arith.cmpf oge, %152, %157 : vector<8x8xf32>
    %cst_56 = arith.constant 1.000000e+00 : f32
    %159 = vector.broadcast %cst_56 : f32 to vector<8x8xf32>
    %160 = arith.select %158, %159, %156 : vector<8x8xi1>, vector<8x8xf32>
    %cst_57 = arith.constant 1.000000e+00 : f32
    %161 = vector.broadcast %cst_57 : f32 to vector<8x8xf32>
    %162 = arith.addf %161, %156 : vector<8x8xf32>
    %163 = tpu.reciprocal %162 {approx = true} : vector<8x8xf32> -> vector<8x8xf32>
    %164 = arith.mulf %160, %163 : vector<8x8xf32>
    %cst_58 = arith.constant 0.000000e+00 : f32
    %165 = vector.broadcast %cst_58 : f32 to vector<8x8xf32>
    %166 = arith.minimumf %152, %165 : vector<8x8xf32>
    %cst_59 = arith.constant 1.000000e+00 : f32
    %167 = vector.broadcast %cst_59 : f32 to vector<8x8xf32>
    %168 = arith.addf %167, %156 : vector<8x8xf32>
    %169 = math.log %168 : vector<8x8xf32>
    %170 = arith.subf %166, %169 : vector<8x8xf32>
    %171 = arith.mulf %164, %116 : vector<8x8xf32>
    %cst_60 = arith.constant 1.000000e+00 : f32
    %172 = vector.broadcast %cst_60 : f32 to vector<8x8xf32>
    %173 = arith.subf %172, %164 : vector<8x8xf32>
    %174 = arith.mulf %173, %151 : vector<8x8xf32>
    %175 = arith.addf %171, %174 : vector<8x8xf32>
    %cst_61 = arith.constant dense<0.000000e+00> : vector<8xf32>
    %176 = vector.multi_reduction <add>, %170, %cst_61 [1] : vector<8x8xf32> to vector<8xf32>
    %177 = vector.shape_cast %176 : vector<8xf32> to vector<8x1xf32>
    %178 = arith.addf %119, %177 : vector<8x1xf32>
    %cst_62 = arith.constant -5.000000e-01 : f32
    %179 = vector.broadcast %cst_62 : f32 to vector<8x8xf32>
    %180 = arith.mulf %179, %0 : vector<8x8xf32>
    %181 = arith.mulf %180, %0 : vector<8x8xf32>
    %cst_63 = arith.constant 0.918938517 : f32
    %182 = vector.broadcast %cst_63 : f32 to vector<8x8xf32>
    %183 = arith.subf %181, %182 : vector<8x8xf32>
    %cst_64 = arith.constant dense<0.000000e+00> : vector<8xf32>
    %184 = vector.multi_reduction <add>, %183, %cst_64 [1] : vector<8x8xf32> to vector<8xf32>
    %185 = vector.shape_cast %184 : vector<8xf32> to vector<8x1xf32>
    %186 = arith.subf %178, %185 : vector<8x1xf32>
    %cst_65 = arith.constant 0.000000e+00 : f32
    %187 = vector.broadcast %cst_65 : f32 to vector<8x94xf32>
    %188 = tpu.concatenate %0, %57, %116, %175, %186, %178, %187 in 1 : vector<8x8xf32>, vector<8x8xf32>, vector<8x8xf32>, vector<8x8xf32>, vector<8x1xf32>, vector<8x1xf32>, vector<8x94xf32> -> vector<8x128xf32>
    %c0_66 = arith.constant 0 : index
    %c0_67 = arith.constant 0 : index
    %189 = vector.load %arg4[%c0_66, %c0_67] : memref<8x128xf32, #tpu.memory_space<vmem>>, vector<8x128xf32>
    tpu.vector_store %arg4[%c0_66, %c0_67], %188 {strides = array<i32>} : memref<8x128xf32, #tpu.memory_space<vmem>>, vector<8x128xf32>,
    return
  }
  func.func @transform_0(%arg0: i32) -> (i32, i32) {
    %c0_i32 = arith.constant 0 : i32
    %c0_i32_0 = arith.constant 0 : i32
    return %arg0, %c0_i32 : i32, i32
  }
  func.func @transform_1(%arg0: i32) -> (i32, i32, i32) {
    %c0_i32 = arith.constant 0 : i32
    %c0_i32_0 = arith.constant 0 : i32
    %c0_i32_1 = arith.constant 0 : i32
    %c0_i32_2 = arith.constant 0 : i32
    return %c0_i32, %c0_i32_0, %c0_i32_1 : i32, i32, i32
  }
  func.func @transform_2(%arg0: i32) -> (i32, i32, i32) {
    %c0_i32 = arith.constant 0 : i32
    %c0_i32_0 = arith.constant 0 : i32
    %c0_i32_1 = arith.constant 0 : i32
    %c0_i32_2 = arith.constant 0 : i32
    return %c0_i32, %c0_i32_0, %c0_i32_1 : i32, i32, i32
  }
  func.func @transform_3(%arg0: i32) -> (i32, i32) {
    %c0_i32 = arith.constant 0 : i32
    %c0_i32_0 = arith.constant 0 : i32
    return %arg0, %c0_i32 : i32, i32
  }
}

</mosaic_0001>

<llo_original>
// kernel: _lambda_.1
$region0: #{_lambda_.1}
  #allocation0 [shape = 'u32[]', space=smem, size = 0x4, offset = 0x4, fixed_abs, tag = 'smem constant byte address 0x4 - core index']
  #allocation1 [shape = 'u32[72,128]{1,0:T(1,128)}', space=vmem, size = 0x9000, scoped, tag = 'internal scratch']
  %s0 = inlined_call_operand.vmem [shape: f32[16,8], index: 0, kind: input, shape index: {}]
  %s1 = inlined_call_operand.hbm [shape: f32[3,72,32], index: 1, kind: input, shape index: {}]
  %s2 = inlined_call_operand.vmem [shape: f32[3,8,32], index: 2, kind: input, shape index: {}]
  %s3 = inlined_call_operand.vmem [shape: f32[16,128], index: 3, kind: output, shape index: {}]
  %s4 = sld [smem:[#allocation0]]
  $region49: #{_lambda_.1} parent=0
    _
  %s6 = ssub.s32 1, %s4
  %s7 = scalar_select 0, %s6, %s4
  $region1: #{_lambda_.1} parent=0
    #allocation2 [shape = 'u8[110592]{0}', space=vmem, size = 0x1b000, scoped, tag = 'input window, operand 1, single buffered']
    #allocation3 [shape = 's32[2]{0}', space=sflag, size = 0x8, scoped, tag = 'scoped memory for _lambda_.1']
    %8 = vsyncpa [#allocation3], 0
    loop: start=0, step=1, limit=4
    $region2: #{_lambda_.1} parent=1 // loop_pre_header
      _
    $region3: #{_lambda_.1} parent=1 // loop_header
      %s10 = sphi 0, %s14
      %p11 = scmp.ge.s32.totalorder %s10, 4
      %s20 = sphi 0, %s22
      %s23 = sphi 0, %s20
      %s24 = sphi 0, %s23
      %s40 = sphi 0, %s24
      %s44 = sphi 0, %s44
      %s46 = sphi 0, %s44
      %s47 = sphi 0, %s46
      %s61 = sphi 0, %s47
      %s65 = sphi 0, %s65
      %s67 = sphi 0, %s65
      %s68 = sphi 0, %s67
      %s82 = sphi 0, %s68
      %s88 = sphi 0, %s90
      %s91 = sphi 0, %s88
      %s92 = sphi 0, %s91
      %s108 = sphi 0, %s92
    $region4: #{_lambda_.1} parent=1 // loop_header_branch
      %13 = sbr.rel (%p11) target = $region8
    $region5: #{_lambda_.1} parent=1 // loop_body
      %s15 = ssub.s32 %s10, 1
      %s16 = ssub.s32 %s10, 2
      %s17 = sadd.s32 %s10, 1
      %s18 = ssub.s32 %s10, %s17
      %p19 = scmp.eq.s32.totalorder %s18, 0
      %s21 = sadd.s32 %s20, 1
      %s22 = scalar_select %p19, %s20, %s21
      %p25 = pneg %p19
      %p26 = scmp.eq.s32.totalorder %s10, 1
      %p27 = por %p25, %p26
      %p28 = scmp.ne.s32.totalorder %s20, %s23
      %p29 = scmp.eq.s32.totalorder %s10, 0
      %p30 = por %p28, %p29
      %p31 = scmp.ne.s32.totalorder %s20, %s23
      %p32 = scmp.eq.s32.totalorder %s15, 1
      %p33 = por %p31, %p32
      %p34 = scmp.ne.s32.totalorder %s23, %s24
      %p35 = scmp.eq.s32.totalorder %s15, 0
      %p36 = por %p34, %p35
      %p37 = scmp.ne.s32.totalorder %s23, %s24
      %p38 = scmp.eq.s32.totalorder %s16, 1
      %p39 = por %p37, %p38
      %p41 = scmp.ne.s32.totalorder %s24, %s40
      %p42 = scmp.eq.s32.totalorder %s16, 0
      %p43 = por %p41, %p42
      %s45 = sadd.s32 %s44, 1
      %p48 = scmp.eq.s32.totalorder %s10, 1
      %p49 = scmp.ne.s32.totalorder %s44, %s46
      %p50 = scmp.eq.s32.totalorder %s10, 0
      %p51 = por %p49, %p50
      %p52 = scmp.ne.s32.totalorder %s44, %s46
      %p53 = scmp.eq.s32.totalorder %s15, 1
      %p54 = por %p52, %p53
      %p55 = scmp.ne.s32.totalorder %s46, %s47
      %p56 = scmp.eq.s32.totalorder %s15, 0
      %p57 = por %p55, %p56
      %p58 = scmp.ne.s32.totalorder %s46, %s47
      %p59 = scmp.eq.s32.totalorder %s16, 1
      %p60 = por %p58, %p59
      %p62 = scmp.ne.s32.totalorder %s47, %s61
      %p63 = scmp.eq.s32.totalorder %s16, 0
      %p64 = por %p62, %p63
      %s66 = sadd.s32 %s65, 1
      %p69 = scmp.eq.s32.totalorder %s10, 1
      %p70 = scmp.ne.s32.totalorder %s65, %s67
      %p71 = scmp.eq.s32.totalorder %s10, 0
      %p72 = por %p70, %p71
      %p73 = scmp.ne.s32.totalorder %s65, %s67
      %p74 = scmp.eq.s32.totalorder %s15, 1
      %p75 = por %p73, %p74
      %p76 = scmp.ne.s32.totalorder %s67, %s68
      %p77 = scmp.eq.s32.totalorder %s15, 0
      %p78 = por %p76, %p77
      %p79 = scmp.ne.s32.totalorder %s67, %s68
      %p80 = scmp.eq.s32.totalorder %s16, 1
      %p81 = por %p79, %p80
      %p83 = scmp.ne.s32.totalorder %s68, %s82
      %p84 = scmp.eq.s32.totalorder %s16, 0
      %p85 = por %p83, %p84
      %s86 = ssub.s32 %s10, %s17
      %p87 = scmp.eq.s32.totalorder %s86, 0
      %s89 = sadd.s32 %s88, 1
      %s90 = scalar_select %p87, %s88, %s89
      %p93 = pneg %p87
      %p94 = scmp.eq.s32.totalorder %s10, 1
      %p95 = por %p93, %p94
      %p96 = scmp.ne.s32.totalorder %s88, %s91
      %p97 = scmp.eq.s32.totalorder %s10, 0
      %p98 = por %p96, %p97
      %p99 = scmp.ne.s32.totalorder %s88, %s91
      %p100 = scmp.eq.s32.totalorder %s15, 1
      %p101 = por %p99, %p100
      %p102 = scmp.ne.s32.totalorder %s91, %s92
      %p103 = scmp.eq.s32.totalorder %s15, 0
      %p104 = por %p102, %p103
      %p105 = scmp.ne.s32.totalorder %s91, %s92
      %p106 = scmp.eq.s32.totalorder %s16, 1
      %p107 = por %p105, %p106
      %p109 = scmp.ne.s32.totalorder %s92, %s108
      %p110 = scmp.eq.s32.totalorder %s16, 0
      %p111 = por %p109, %p110
      %p112 = scmp.le.s32.totalorder 1, %s10
      %p113 = scmp.lt.s32.totalorder %s10, 3
      %p114 = pnand %p112, %p113
      %p115 = pneg %p114
      // Predicated region
      $region9: #{_lambda_.1} parent=5 // pred_check
        _
      $region10: #{_lambda_.1} parent=5 // pred_check_branch
        %117 = sbr.rel (%p114) target = $region12
      $region11: #{_lambda_.1} parent=5 // pred_region
        %s118 = ssub.s32 %s10, 1
        // Predicated region
        $region13: #{_lambda_.1} parent=11 // pred_check
          %p119 = pneg %p57
        $region14: #{_lambda_.1} parent=11 // pred_check_branch
          %121 = sbr.rel (%p119) target = $region16
        $region15: #{_lambda_.1} parent=11 // pred_region
          %123 = vsyncadd [#allocation3], 0
          %s124 = sshll.u32 %s1, 4
          %s125 = int_to_ptr.hbm [resolvable:$true] %s124
          %s126 = sshll.u32 [#allocation2], 4
          %s127 = int_to_ptr.vmem [resolvable:$true] %s126
          %132 = dma.hbm_to_vmem [thread:$0]  %s125, 3456, %s127, [#allocation3], 128, 128, 8
        $region16: #{_lambda_.1} parent=11 // pred_fallthru
          _
        // Predicated region
        $region17: #{_lambda_.1} parent=11 // pred_check
          %p133 = pneg %p78
        $region18: #{_lambda_.1} parent=11 // pred_check_branch
          %135 = sbr.rel (%p133) target = $region20
        $region19: #{_lambda_.1} parent=11 // pred_region
          _
        $region20: #{_lambda_.1} parent=11 // pred_fallthru
          _
      $region12: #{_lambda_.1} parent=5 // pred_fallthru
        _
      %p136 = scmp.lt.s32.totalorder %s10, 2
      // Predicated region
      $region21: #{_lambda_.1} parent=5 // pred_check
        %p137 = pneg %p136
      $region22: #{_lambda_.1} parent=5 // pred_check_branch
        %139 = sbr.rel (%p137) target = $region24
      $region23: #{_lambda_.1} parent=5 // pred_region
        // Predicated region
        $region25: #{_lambda_.1} parent=23 // pred_check
          %p140 = pneg %p30
        $region26: #{_lambda_.1} parent=23 // pred_check_branch
          %142 = sbr.rel (%p140) target = $region28
        $region27: #{_lambda_.1} parent=23 // pred_region
          %p143 = scmp.lt.s32.totalorder %s10, 1
          %s144 = scalar_select %p143, %s10, 1
          %s145 = smul.addr %s144, 8
          %s146 = scalar_lea.vmem %s0, %s145
        $region28: #{_lambda_.1} parent=23 // pred_fallthru
          _
      $region24: #{_lambda_.1} parent=5 // pred_fallthru
        _
      %p147 = scmp.le.s32.totalorder 1, %s10
      %p148 = scmp.lt.s32.totalorder %s10, 3
      %p149 = pnand %p147, %p148
      %p150 = pneg %p149
      // Predicated region
      $region29: #{_lambda_.1} parent=5 // pred_check
        _
      $region30: #{_lambda_.1} parent=5 // pred_check_branch
        %152 = sbr.rel (%p149) target = $region32
      $region31: #{_lambda_.1} parent=5 // pred_region
        %s153 = ssub.s32 %s10, 1
        // Predicated region
        $region33: #{_lambda_.1} parent=31 // pred_check
          %p154 = pneg %p57
        $region34: #{_lambda_.1} parent=31 // pred_check_branch
          %156 = sbr.rel (%p154) target = $region36
        $region35: #{_lambda_.1} parent=31 // pred_region
          %158 = dma.done [#allocation3], 3456
        $region36: #{_lambda_.1} parent=31 // pred_fallthru
          _
        %p159 = scmp.lt.s32.totalorder %s15, 1
        %s160 = scalar_select %p159, %s15, 1
        %s161 = smul.addr %s160, 8
        %s162 = scalar_lea.vmem %s0, %s161
        %p163 = pneg %p36
        %p164 = pneg %p33
        %p165 = pneg %p57
        %p166 = pneg %p54
        %p167 = pneg %p78
        %p168 = pneg %p75
        %p169 = pneg %p104
        %p170 = pneg %p101
        %p171 = scmp.lt.s32.totalorder %s15, 1
        %s172 = scalar_select %p171, %s15, 1
        %s173 = smul.addr %s172, 8
        %s174 = scalar_lea.vmem %s3, %s173
        %p175 = scmp.lt.s32.totalorder %s15, 1
        %s176 = scalar_select %p175, %s15, 1
        %s177 = smul.addr %s176, 8
        %s178 = scalar_lea.vmem %s0, %s177
        %p179 = scmp.lt.s32.totalorder %s15, 1
        %s180 = scalar_select %p179, %s15, 1
        %s181 = smul.addr %s180, 8
        %s182 = scalar_lea.vmem %s3, %s181
        %v183 = vld [vmem:[%s178] sm:$0xff]
        %v184 = vld [vmem:[#allocation2] sm:$0xff]
        %v185 = vld [vmem:[#allocation2 + $0x8] sm:$0xff]
        %v186 = vld [vmem:[#allocation2 + $0x10] sm:$0xff]
        %v187 = vld [vmem:[#allocation2 + $0x18] sm:$0xff]
        %v188 = vld [vmem:[#allocation2 + $0x20] sm:$0xff]
        %v189 = vld [vmem:[#allocation2 + $0x28] sm:$0xff]
        %v190 = vld [vmem:[#allocation2 + $0x30] sm:$0xff]
        %v191 = vld [vmem:[#allocation2 + $0x38] sm:$0xff]
        %v192 = vld [vmem:[#allocation2 + $0x40] sm:$0xff]
        %v193 = vld [vmem:[%s2] sm:$0xff]
        %v194 = vperm.slane %v193, 0
        %vm195 = vcmask 64512
        %v197 = vsel %vm195, %v183, 0
        %199 = vmatpush.msra.mxu0 0.0
        %200 = vmatpush.msra.mxu0 0.0
        %201 = vmatpush.msra.mxu0 0.0
        %202 = vmatpush.msra.mxu0 0.0
        %203 = vmatpush.msra.mxu0 0.0
        %204 = vmatpush.msra.mxu0 0.0
        %205 = vmatpush.msra.mxu0 0.0
        %206 = vmatpush.msra.mxu0 0.0
        %207 = vmatpush.msra.mxu0 0.0
        %208 = vmatpush.msra.mxu0 0.0
        %209 = vmatpush.msra.mxu0 0.0
        %210 = vmatpush.msra.mxu0 0.0
        %211 = vmatpush.msra.mxu0 0.0
        %212 = vmatpush.msra.mxu0 0.0
        %213 = vmatpush.msra.mxu0 0.0
        %214 = vmatpush.msra.mxu0 %v184
        %215 = vmatmul.f32.gmra.mxu0 %v197
        %v216 = vpop.f32.mrf.mxu0
        %v217 = vadd.f32 %v194, %v216
        %218 = vdwg.mxu0
        %vm219 = vcmp.gt.f32.partialorder %v217, 0.0
        %v220 = vmul.f32 %v217, 1.442695
        %v221 = vpow.pop %v220
        %v222 = vsub.f32 %v221, 1.0
        %v223 = vsel %vm219, %v217, %v222
        %v224 = vperm.slane %v193, 1
        %vm225 = vcmask 261120
        %v227 = vsel %vm225, %v223, 0
        %229 = vmatpush.msra.mxu0 0.0
        %230 = vmatpush.msra.mxu0 0.0
        %231 = vmatpush.msra.mxu0 0.0
        %232 = vmatpush.msra.mxu0 0.0
        %233 = vmatpush.msra.mxu0 0.0
        %234 = vmatpush.msra.mxu0 0.0
        %235 = vmatpush.msra.mxu0 0.0
        %236 = vmatpush.msra.mxu0 0.0
        %237 = vmatpush.msra.mxu0 0.0
        %238 = vmatpush.msra.mxu0 0.0
        %239 = vmatpush.msra.mxu0 0.0
        %240 = vmatpush.msra.mxu0 0.0
        %241 = vmatpush.msra.mxu0 %v188
        %242 = vmatpush.msra.mxu0 %v187
        %243 = vmatpush.msra.mxu0 %v186
        %244 = vmatpush.msra.mxu0 %v185
        %245 = vmatmul.f32.gmra.mxu0 %v227
        %v246 = vpop.f32.mrf.mxu0
        %v247 = vadd.f32 %v224, %v246
        %248 = vdwg.mxu0
        %vm249 = vcmp.gt.f32.partialorder %v247, 0.0
        %v250 = vmul.f32 %v247, 1.442695
        %v251 = vpow.pop %v250
        %v252 = vsub.f32 %v251, 1.0
        %v253 = vsel %vm249, %v247, %v252
        %v254 = vperm.slane %v193, 2
        %v256 = vsel %vm225, %v253, 0
        %258 = vmatpush.msra.mxu0 0.0
        %259 = vmatpush.msra.mxu0 0.0
        %260 = vmatpush.msra.mxu0 0.0
        %261 = vmatpush.msra.mxu0 0.0
        %262 = vmatpush.msra.mxu0 0.0
        %263 = vmatpush.msra.mxu0 0.0
        %264 = vmatpush.msra.mxu0 0.0
        %265 = vmatpush.msra.mxu0 0.0
        %266 = vmatpush.msra.mxu0 0.0
        %267 = vmatpush.msra.mxu0 0.0
        %268 = vmatpush.msra.mxu0 0.0
        %269 = vmatpush.msra.mxu0 0.0
        %270 = vmatpush.msra.mxu0 %v192
        %271 = vmatpush.msra.mxu0 %v191
        %272 = vmatpush.msra.mxu0 %v190
        %273 = vmatpush.msra.mxu0 %v189
        %274 = vmatmul.f32.gmra.mxu0 %v256
        %v275 = vpop.f32.mrf.mxu0
        %v276 = vadd.f32 %v254, %v275
        %277 = vdwg.mxu0
        %v278 = vand.u32 2147483647, %v276
        %v279 = vsub.f32 0.0, %v278
        %v280 = vmul.f32 %v279, 1.442695
        %v281 = vpow.pop %v280
        %vm282 = vcmp.ge.f32.partialorder %v276, 0.0
        %v283 = vsel %vm282, 1.0, %v281
        %v284 = vadd.f32 %v281, 1.0
        %v285 = vrcp.pop %v284
        %v286 = vmul.f32 %v283, %v285
        %v287 = vmin.f32 %v276, 0.0
        %v288 = vlog2.pop %v284
        %v289 = vmul.f32 %v288, 0.6931472
        %v290 = vsub.f32 %v287, %v289
        %291 = vrot.lane.b32.xlu0 %v183, 8
        %v292 = vpop.permute.xlu0 %291
        %v294 = vmul.f32 %v286, %v292
        %v295 = vsub.f32 1.0, %v286
        %297 = vrot.lane.b32.xlu0 %v276, 8
        %v298 = vpop.permute.xlu0 %297
        %v300 = vmul.f32 %v295, %v298
        %v301 = vadd.f32 %v294, %v300
        %303 = vrot.lane.b32.xlu0 %v290, 120
        %v304 = vpop.permute.xlu0 %303
        %v306 = vsel %vm195, %v304, 0.0
        %307 = vadd.xlane.f32.xlu0 %v306
        %v308 = vpop.xlane.xlu0 %307
        %v309 = vadd.f32 %v308, 0.0
        %s310 = scalar_lea.vmem [#allocation2], 72
        %v311 = vld [vmem:[%s310] sm:$0xff]
        %v312 = vld [vmem:[%s310 + $0x8] sm:$0xff]
        %v313 = vld [vmem:[%s310 + $0x10] sm:$0xff]
        %v314 = vld [vmem:[%s310 + $0x18] sm:$0xff]
        %v315 = vld [vmem:[%s310 + $0x20] sm:$0xff]
        %v316 = vld [vmem:[%s310 + $0x28] sm:$0xff]
        %v317 = vld [vmem:[%s310 + $0x30] sm:$0xff]
        %v318 = vld [vmem:[%s310 + $0x38] sm:$0xff]
        %v319 = vld [vmem:[%s310 + $0x40] sm:$0xff]
        %s320 = scalar_lea.vmem %s2, 8
        %v321 = vld [vmem:[%s320] sm:$0xff]
        %v322 = vperm.slane %v321, 0
        %324 = vrot.lane.b32.xlu0 %v301, 120
        %v325 = vpop.permute.xlu0 %324
        %v326 = vsel %vm195, %v325, 0
        %328 = vmatpush.msra.mxu0 0.0
        %329 = vmatpush.msra.mxu0 0.0
        %330 = vmatpush.msra.mxu0 0.0
        %331 = vmatpush.msra.mxu0 0.0
        %332 = vmatpush.msra.mxu0 0.0
        %333 = vmatpush.msra.mxu0 0.0
        %334 = vmatpush.msra.mxu0 0.0
        %335 = vmatpush.msra.mxu0 0.0
        %336 = vmatpush.msra.mxu0 0.0
        %337 = vmatpush.msra.mxu0 0.0
        %338 = vmatpush.msra.mxu0 0.0
        %339 = vmatpush.msra.mxu0 0.0
        %340 = vmatpush.msra.mxu0 0.0
        %341 = vmatpush.msra.mxu0 0.0
        %342 = vmatpush.msra.mxu0 0.0
        %343 = vmatpush.msra.mxu0 %v311
        %344 = vmatmul.f32.gmra.mxu0 %v326
        %v345 = vpop.f32.mrf.mxu0
        %v346 = vadd.f32 %v322, %v345
        %347 = vdwg.mxu0
        %vm348 = vcmp.gt.f32.partialorder %v346, 0.0
        %v349 = vmul.f32 %v346, 1.442695
        %v350 = vpow.pop %v349
        %v351 = vsub.f32 %v350, 1.0
        %v352 = vsel %vm348, %v346, %v351
        %v353 = vperm.slane %v321, 1
        %v355 = vsel %vm225, %v352, 0
        %357 = vmatpush.msra.mxu0 0.0
        %358 = vmatpush.msra.mxu0 0.0
        %359 = vmatpush.msra.mxu0 0.0
        %360 = vmatpush.msra.mxu0 0.0
        %361 = vmatpush.msra.mxu0 0.0
        %362 = vmatpush.msra.mxu0 0.0
        %363 = vmatpush.msra.mxu0 0.0
        %364 = vmatpush.msra.mxu0 0.0
        %365 = vmatpush.msra.mxu0 0.0
        %366 = vmatpush.msra.mxu0 0.0
        %367 = vmatpush.msra.mxu0 0.0
        %368 = vmatpush.msra.mxu0 0.0
        %369 = vmatpush.msra.mxu0 %v315
        %370 = vmatpush.msra.mxu0 %v314
        %371 = vmatpush.msra.mxu0 %v313
        %372 = vmatpush.msra.mxu0 %v312
        %373 = vmatmul.f32.gmra.mxu0 %v355
        %v374 = vpop.f32.mrf.mxu0
        %v375 = vadd.f32 %v353, %v374
        %376 = vdwg.mxu0
        %vm377 = vcmp.gt.f32.partialorder %v375, 0.0
        %v378 = vmul.f32 %v375, 1.442695
        %v379 = vpow.pop %v378
        %v380 = vsub.f32 %v379, 1.0
        %v381 = vsel %vm377, %v375, %v380
        %v382 = vperm.slane %v321, 2
        %v384 = vsel %vm225, %v381, 0
        %386 = vmatpush.msra.mxu0 0.0
        %387 = vmatpush.msra.mxu0 0.0
        %388 = vmatpush.msra.mxu0 0.0
        %389 = vmatpush.msra.mxu0 0.0
        %390 = vmatpush.msra.mxu0 0.0
        %391 = vmatpush.msra.mxu0 0.0
        %392 = vmatpush.msra.mxu0 0.0
        %393 = vmatpush.msra.mxu0 0.0
        %394 = vmatpush.msra.mxu0 0.0
        %395 = vmatpush.msra.mxu0 0.0
        %396 = vmatpush.msra.mxu0 0.0
        %397 = vmatpush.msra.mxu0 0.0
        %398 = vmatpush.msra.mxu0 %v319
        %399 = vmatpush.msra.mxu0 %v318
        %400 = vmatpush.msra.mxu0 %v317
        %401 = vmatpush.msra.mxu0 %v316
        %402 = vmatmul.f32.gmra.mxu0 %v384
        %v403 = vpop.f32.mrf.mxu0
        %v404 = vadd.f32 %v382, %v403
        %405 = vdwg.mxu0
        %v406 = vand.u32 2147483647, %v404
        %v407 = vsub.f32 0.0, %v406
        %v408 = vmul.f32 %v407, 1.442695
        %v409 = vpow.pop %v408
        %vm410 = vcmp.ge.f32.partialorder %v404, 0.0
        %v411 = vsel %vm410, 1.0, %v409
        %v412 = vadd.f32 %v409, 1.0
        %v413 = vrcp.pop %v412
        %v414 = vmul.f32 %v411, %v413
        %v415 = vmin.f32 %v404, 0.0
        %v416 = vlog2.pop %v412
        %v417 = vmul.f32 %v416, 0.6931472
        %v418 = vsub.f32 %v415, %v417
        %v419 = vmul.f32 %v414, %v301
        %v420 = vsub.f32 1.0, %v414
        %422 = vrot.lane.b32.xlu0 %v404, 8
        %v423 = vpop.permute.xlu0 %422
        %v425 = vmul.f32 %v420, %v423
        %v426 = vadd.f32 %v419, %v425
        %428 = vrot.lane.b32.xlu0 %v418, 120
        %v429 = vpop.permute.xlu0 %428
        %v431 = vsel %vm195, %v429, 0.0
        %432 = vadd.xlane.f32.xlu0 %v431
        %v433 = vpop.xlane.xlu0 %432
        %v434 = vadd.f32 %v309, %v433
        %s435 = scalar_lea.vmem [#allocation2], 144
        %v436 = vld [vmem:[%s435] sm:$0xff]
        %v437 = vld [vmem:[%s435 + $0x8] sm:$0xff]
        %v438 = vld [vmem:[%s435 + $0x10] sm:$0xff]
        %v439 = vld [vmem:[%s435 + $0x18] sm:$0xff]
        %v440 = vld [vmem:[%s435 + $0x20] sm:$0xff]
        %v441 = vld [vmem:[%s435 + $0x28] sm:$0xff]
        %v442 = vld [vmem:[%s435 + $0x30] sm:$0xff]
        %v443 = vld [vmem:[%s435 + $0x38] sm:$0xff]
        %v444 = vld [vmem:[%s435 + $0x40] sm:$0xff]
        %s445 = scalar_lea.vmem %s2, 16
        %v446 = vld [vmem:[%s445] sm:$0xff]
        %v447 = vperm.slane %v446, 0
        %449 = vrot.lane.b32.xlu0 %v426, 120
        %v450 = vpop.permute.xlu0 %449
        %v451 = vsel %vm195, %v450, 0
        %453 = vmatpush.msra.mxu0 0.0
        %454 = vmatpush.msra.mxu0 0.0
        %455 = vmatpush.msra.mxu0 0.0
        %456 = vmatpush.msra.mxu0 0.0
        %457 = vmatpush.msra.mxu0 0.0
        %458 = vmatpush.msra.mxu0 0.0
        %459 = vmatpush.msra.mxu0 0.0
        %460 = vmatpush.msra.mxu0 0.0
        %461 = vmatpush.msra.mxu0 0.0
        %462 = vmatpush.msra.mxu0 0.0
        %463 = vmatpush.msra.mxu0 0.0
        %464 = vmatpush.msra.mxu0 0.0
        %465 = vmatpush.msra.mxu0 0.0
        %466 = vmatpush.msra.mxu0 0.0
        %467 = vmatpush.msra.mxu0 0.0
        %468 = vmatpush.msra.mxu0 %v436
        %469 = vmatmul.f32.gmra.mxu0 %v451
        %v470 = vpop.f32.mrf.mxu0
        %v471 = vadd.f32 %v447, %v470
        %472 = vdwg.mxu0
        %vm473 = vcmp.gt.f32.partialorder %v471, 0.0
        %v474 = vmul.f32 %v471, 1.442695
        %v475 = vpow.pop %v474
        %v476 = vsub.f32 %v475, 1.0
        %v477 = vsel %vm473, %v471, %v476
        %v478 = vperm.slane %v446, 1
        %v480 = vsel %vm225, %v477, 0
        %482 = vmatpush.msra.mxu0 0.0
        %483 = vmatpush.msra.mxu0 0.0
        %484 = vmatpush.msra.mxu0 0.0
        %485 = vmatpush.msra.mxu0 0.0
        %486 = vmatpush.msra.mxu0 0.0
        %487 = vmatpush.msra.mxu0 0.0
        %488 = vmatpush.msra.mxu0 0.0
        %489 = vmatpush.msra.mxu0 0.0
        %490 = vmatpush.msra.mxu0 0.0
        %491 = vmatpush.msra.mxu0 0.0
        %492 = vmatpush.msra.mxu0 0.0
        %493 = vmatpush.msra.mxu0 0.0
        %494 = vmatpush.msra.mxu0 %v440
        %495 = vmatpush.msra.mxu0 %v439
        %496 = vmatpush.msra.mxu0 %v438
        %497 = vmatpush.msra.mxu0 %v437
        %498 = vmatmul.f32.gmra.mxu0 %v480
        %v499 = vpop.f32.mrf.mxu0
        %v500 = vadd.f32 %v478, %v499
        %501 = vdwg.mxu0
        %vm502 = vcmp.gt.f32.partialorder %v500, 0.0
        %v503 = vmul.f32 %v500, 1.442695
        %v504 = vpow.pop %v503
        %v505 = vsub.f32 %v504, 1.0
        %v506 = vsel %vm502, %v500, %v505
        %v507 = vperm.slane %v446, 2
        %v509 = vsel %vm225, %v506, 0
        %511 = vmatpush.msra.mxu0 0.0
        %512 = vmatpush.msra.mxu0 0.0
        %513 = vmatpush.msra.mxu0 0.0
        %514 = vmatpush.msra.mxu0 0.0
        %515 = vmatpush.msra.mxu0 0.0
        %516 = vmatpush.msra.mxu0 0.0
        %517 = vmatpush.msra.mxu0 0.0
        %518 = vmatpush.msra.mxu0 0.0
        %519 = vmatpush.msra.mxu0 0.0
        %520 = vmatpush.msra.mxu0 0.0
        %521 = vmatpush.msra.mxu0 0.0
        %522 = vmatpush.msra.mxu0 0.0
        %523 = vmatpush.msra.mxu0 %v444
        %524 = vmatpush.msra.mxu0 %v443
        %525 = vmatpush.msra.mxu0 %v442
        %526 = vmatpush.msra.mxu0 %v441
        %527 = vmatmul.f32.gmra.mxu0 %v509
        %v528 = vpop.f32.mrf.mxu0
        %v529 = vadd.f32 %v507, %v528
        %530 = vdwg.mxu0
        %v531 = vand.u32 2147483647, %v529
        %v532 = vsub.f32 0.0, %v531
        %v533 = vmul.f32 %v532, 1.442695
        %v534 = vpow.pop %v533
        %vm535 = vcmp.ge.f32.partialorder %v529, 0.0
        %v536 = vsel %vm535, 1.0, %v534
        %v537 = vadd.f32 %v534, 1.0
        %v538 = vrcp.pop %v537
        %v539 = vmul.f32 %v536, %v538
        %v540 = vmin.f32 %v529, 0.0
        %v541 = vlog2.pop %v537
        %v542 = vmul.f32 %v541, 0.6931472
        %v543 = vsub.f32 %v540, %v542
        %v544 = vmul.f32 %v539, %v426
        %v545 = vsub.f32 1.0, %v539
        %547 = vrot.lane.b32.xlu0 %v529, 8
        %v548 = vpop.permute.xlu0 %547
        %v550 = vmul.f32 %v545, %v548
        %v551 = vadd.f32 %v544, %v550
        %553 = vrot.lane.b32.xlu0 %v543, 120
        %v554 = vpop.permute.xlu0 %553
        %v556 = vsel %vm195, %v554, 0.0
        %557 = vadd.xlane.f32.xlu0 %v556
        %v558 = vpop.xlane.xlu0 %557
        %v559 = vadd.f32 %v434, %v558
        %v560 = vmul.f32 %v183, -0.5
        %v561 = vmul.f32 %v560, %v183
        %v562 = vsub.f32 %v561, 0.9189385
        %v563 = vsel %vm195, %v562, 0.0
        %564 = vadd.xlane.f32.xlu0 %v563
        %v565 = vpop.xlane.xlu0 %564
        %v566 = vsub.f32 %v559, %v565
        %567 = vrot.lane.b32.xlu0 %v426, 8
        %v568 = vpop.permute.xlu0 %567
        %571 = vrot.lane.b32.xlu0 %v551, 16
        %v572 = vpop.permute.xlu0 %571
        %v574 = vsel %vm195, %v183, %v301
        %vm575 = vcmask 130048
        %v576 = vsel %vm575, %v574, %v568
        %vm577 = vcmask 195584
        %v578 = vsel %vm577, %v576, %v572
        %v579 = vsel %vm225, %v578, %v566
        %vm580 = vcmask 269312
        %v581 = vsel %vm580, %v579, %v559
        %vm582 = vcmask 277504
        %v583 = vsel %vm582, %v581, 0.0
        %584 = vst [vmem:[%s182] sm:$0xff] %v583
        %p585 = scmp.lt.s32.totalorder %s15, 1
        %s586 = scalar_select %p585, %s15, 1
        %s587 = smul.addr %s586, 8
        %s588 = scalar_lea.vmem %s3, %s587
        // Predicated region
        $region37: #{_lambda_.1} parent=31 // pred_check
          %p589 = pneg %p101
        $region38: #{_lambda_.1} parent=31 // pred_check_branch
          %591 = sbr.rel (%p589) target = $region40
        $region39: #{_lambda_.1} parent=31 // pred_region
          _
        $region40: #{_lambda_.1} parent=31 // pred_fallthru
          _
      $region32: #{_lambda_.1} parent=5 // pred_fallthru
        _
      %p592 = scmp.le.s32.totalorder 2, %s10
      // Predicated region
      $region41: #{_lambda_.1} parent=5 // pred_check
        %p593 = pneg %p592
      $region42: #{_lambda_.1} parent=5 // pred_check_branch
        %595 = sbr.rel (%p593) target = $region44
      $region43: #{_lambda_.1} parent=5 // pred_region
        %s596 = ssub.s32 %s10, 2
        // Predicated region
        $region45: #{_lambda_.1} parent=43 // pred_check
          %p597 = pneg %p107
        $region46: #{_lambda_.1} parent=43 // pred_check_branch
          %599 = sbr.rel (%p597) target = $region48
        $region47: #{_lambda_.1} parent=43 // pred_region
          %p600 = scmp.lt.s32.totalorder %s16, 1
          %s601 = scalar_select %p600, %s16, 1
          %s602 = smul.addr %s601, 8
          %s603 = scalar_lea.vmem %s3, %s602
        $region48: #{_lambda_.1} parent=43 // pred_fallthru
          _
      $region44: #{_lambda_.1} parent=5 // pred_fallthru
        _
    $region6: #{_lambda_.1} parent=1 // loop_footer
      %s14 = sadd.s32 1, %s10
    $region7: #{_lambda_.1} parent=1 // loop_footer_branch
      %9 = sbr.rel target = $region3
    $region8: #{_lambda_.1} parent=1 // loop_exit
      _
    %604 = vsyncpa [#allocation3], 1
    %s605 = scalar_lea.sflag [#allocation3], 1
    %606 = vsyncpa %s605, 1

</llo_original>
